<compile_context>
chip_gen: v7x
topology: tpu7x:2x2x1
jax: 0.10.0
libtpu: 0.0.40
codegen_flags: <defaults>
</compile_context>

<pallas_src>
import functools

import jax
import jax.numpy as jnp
from jax.experimental import pallas as pl
from jax.experimental.pallas import tpu as pltpu


def _agg_kernel(adj_ref, x_ref, o_ref):
    # adj: (M, M), x: (M, TC) lane-tile of (M, B*Cin)  ->  o: (M, TC)
    o_ref[...] = jnp.dot(adj_ref[...], x_ref[...],
                         preferred_element_type=jnp.float32).astype(o_ref.dtype)


def _fc_act_kernel(slope, x_ref, w_ref, b_ref, o_ref):
    # x: (TR, Cin) row-tile of (M*B, Cin), w: (Cin, Cout), b: (1, Cout) -> o: (TR, Cout)
    h = jnp.dot(x_ref[...], w_ref[...],
                preferred_element_type=jnp.float32) + b_ref[...]
    o_ref[...] = jnp.where(h > 0, h, slope * h).astype(o_ref.dtype)


def _tile(total, target, align):
    """Largest multiple of `align` that divides `total` and is <= target; else `total`."""
    if total <= target:
        return total
    t = (target // align) * align
    while t >= align:
        if total % t == 0:
            return t
        t -= align
    return total


@functools.partial(jax.jit, static_argnames=("activation",))
def gcn_operation_forward(x, adj, weight, bias, activation="leakyRelu"):
    """
    x: (3N, B, Cin), adj: (3N, 3N), weight: (Cin, Cout), bias: (Cout,)
    returns: (3N, B, Cout) = activation(Linear(einsum('nm,mbc->nbc', adj, x)))
    """
    M, B, Cin = x.shape
    Cout = weight.shape[1]
    slope = 0.0 if activation == "relu" else 0.01   # F.leaky_relu default slope

    x = x.astype(jnp.float32)
    adj = adj.astype(jnp.float32)
    weight = weight.astype(jnp.float32)
    bias2 = bias.astype(jnp.float32).reshape(1, Cout)

    # ---- Kernel 1: aggregation  Y = A @ X  --------------------------------
    BC = B * Cin
    xf = x.reshape(M, BC)                       # free row-major reshape in HBM
    tc = _tile(BC, 256, 128)                    # lane tile (multiple of 128 or full dim)
    y = pl.pallas_call(
        _agg_kernel,
        out_shape=jax.ShapeDtypeStruct((M, BC), jnp.float32),
        grid=(BC // tc,),
        in_specs=[
            pl.BlockSpec((M, M), lambda j: (0, 0)),     # adj, VMEM resident
            pl.BlockSpec((M, tc), lambda j: (0, j)),
        ],
        out_specs=pl.BlockSpec((M, tc), lambda j: (0, j)),
        compiler_params=pltpu.CompilerParams(dimension_semantics=("parallel",)),
    )(adj, xf)

    # ---- Kernel 2: shared FC + activation  Z = act(Y @ W + b)  ------------
    MB = M * B
    y2 = y.reshape(MB, Cin)                     # free row-major reshape in HBM
    tr = _tile(MB, 384, 8)                      # row tile (multiple of 8 or full dim)
    z = pl.pallas_call(
        functools.partial(_fc_act_kernel, slope),
        out_shape=jax.ShapeDtypeStruct((MB, Cout), jnp.float32),
        grid=(MB // tr,),
        in_specs=[
            pl.BlockSpec((tr, Cin), lambda i: (i, 0)),
            pl.BlockSpec((Cin, Cout), lambda i: (0, 0)),   # W, VMEM resident
            pl.BlockSpec((1, Cout), lambda i: (0, 0)),     # bias, VMEM resident
        ],
        out_specs=pl.BlockSpec((tr, Cout), lambda i: (i, 0)),
        compiler_params=pltpu.CompilerParams(dimension_semantics=("parallel",)),
    )(y2, weight, bias2)

    return z.reshape(M, B, Cout)


def _reference_forward(x, adj, weight, bias, activation="leakyRelu"):
    """Plain-JAX replica of the PyTorch forward, for correctness checking."""
    hp = jax.lax.Precision.HIGHEST
    y = jnp.einsum("nm,mbc->nbc", adj, x, precision=hp)
    z = jnp.einsum("nbc,co->nbo", y, weight, precision=hp) + bias
    if activation == "relu":
        return jnp.maximum(z, 0.0)
    return jnp.where(z > 0, z, 0.01 * z)


if __name__ == "__main__":
    num_of_vertices = 16
    M = 3 * num_of_vertices          # 48 rows (the "3*N" axis)
    B, Cin, Cout = 16, 32, 64

    key = jax.random.PRNGKey(0)
    kx, ka, kw, kb = jax.random.split(key, 4)
    x = jax.random.normal(kx, (M, B, Cin), jnp.float32)
    adj = jax.random.normal(ka, (M, M), jnp.float32) * 0.1
    weight = jax.random.normal(kw, (Cin, Cout), jnp.float32) * 0.1
    bias = jax.random.normal(kb, (Cout,), jnp.float32) * 0.1

    out = gcn_operation_forward(x, adj, weight, bias, activation="leakyRelu")
    out = jax.block_until_ready(out)

    ref = _reference_forward(x, adj, weight, bias, activation="leakyRelu")
    assert out.shape == (M, B, Cout), out.shape
    assert jnp.allclose(out, ref, atol=1e-3, rtol=1e-3), float(jnp.max(jnp.abs(out - ref)))
    print("KERNEL_OK")
</pallas_src>

<mosaic_0001>
module attributes {stable_mosaic.version = 11 : i64} {
  func.func @_fc_act_kernel(%arg0: i32, %arg1: memref<384x32xf32, #tpu.memory_space<vmem>>, %arg2: memref<32x64xf32, #tpu.memory_space<vmem>>, %arg3: memref<1x64xf32, #tpu.memory_space<vmem>>, %arg4: memref<384x64xf32, #tpu.memory_space<vmem>>) attributes {dimension_semantics = [#tpu.dimension_semantics<parallel>], iteration_bounds = array<i64: 2>, scalar_prefetch = 0 : i64, scratch_operands = 0 : i64, tpu.core_type = #tpu.core_type<tc>, window_params = [{transform_indices = @transform_0, window_bounds = array<i64: 384, 32>}, {pipeline_mode = #tpu.pipeline_mode<synchronous>, transform_indices = @transform_1, window_bounds = array<i64: 32, 64>}, {pipeline_mode = #tpu.pipeline_mode<synchronous>, transform_indices = @transform_2, window_bounds = array<i64: 1, 64>}, {transform_indices = @transform_3, window_bounds = array<i64: 384, 64>}]} {
    %c0 = arith.constant 0 : index
    %c0_0 = arith.constant 0 : index
    %0 = vector.load %arg1[%c0, %c0_0] : memref<384x32xf32, #tpu.memory_space<vmem>>, vector<384x32xf32>
    %c0_1 = arith.constant 0 : index
    %c0_2 = arith.constant 0 : index
    %1 = vector.load %arg2[%c0_1, %c0_2] : memref<32x64xf32, #tpu.memory_space<vmem>>, vector<32x64xf32>
    %cst = arith.constant dense<0.000000e+00> : vector<384x64xf32>
    %2 = tpu.matmul %0, %1, %cst {dimension_numbers = #tpu.dot_dimension_numbers<[1], [0], [0], [1], [0, 0, 1, 1], [], []>} : vector<384x32xf32>, vector<32x64xf32>, vector<384x64xf32> -> vector<384x64xf32>
    %c0_3 = arith.constant 0 : index
    %c0_4 = arith.constant 0 : index
    %3 = vector.load %arg3[%c0_3, %c0_4] : memref<1x64xf32, #tpu.memory_space<vmem>>, vector<1x64xf32>
    %4 = vector.broadcast %3 : vector<1x64xf32> to vector<384x64xf32>
    %5 = arith.addf %2, %4 : vector<384x64xf32>
    %cst_5 = arith.constant 0.000000e+00 : f32
    %6 = vector.broadcast %cst_5 : f32 to vector<384x64xf32>
    %7 = arith.cmpf ogt, %5, %6 : vector<384x64xf32>
    %cst_6 = arith.constant 0.00999999977 : f32
    %8 = vector.broadcast %cst_6 : f32 to vector<384x64xf32>
    %9 = arith.mulf %8, %5 : vector<384x64xf32>
    %10 = arith.select %7, %5, %9 : vector<384x64xi1>, vector<384x64xf32>
    %c0_7 = arith.constant 0 : index
    %c0_8 = arith.constant 0 : index
    %11 = vector.load %arg4[%c0_7, %c0_8] : memref<384x64xf32, #tpu.memory_space<vmem>>, vector<384x64xf32>
    tpu.vector_store %arg4[%c0_7, %c0_8], %10 {strides = array<i32>} : memref<384x64xf32, #tpu.memory_space<vmem>>, vector<384x64xf32>,
    return
  }
  func.func @transform_0(%arg0: i32) -> (i32, i32) {
    %c0_i32 = arith.constant 0 : i32
    %c0_i32_0 = arith.constant 0 : i32
    return %arg0, %c0_i32 : i32, i32
  }
  func.func @transform_1(%arg0: i32) -> (i32, i32) {
    %c0_i32 = arith.constant 0 : i32
    %c0_i32_0 = arith.constant 0 : i32
    %c0_i32_1 = arith.constant 0 : i32
    return %c0_i32, %c0_i32_0 : i32, i32
  }
  func.func @transform_2(%arg0: i32) -> (i32, i32) {
    %c0_i32 = arith.constant 0 : i32
    %c0_i32_0 = arith.constant 0 : i32
    %c0_i32_1 = arith.constant 0 : i32
    return %c0_i32, %c0_i32_0 : i32, i32
  }
  func.func @transform_3(%arg0: i32) -> (i32, i32) {
    %c0_i32 = arith.constant 0 : i32
    %c0_i32_0 = arith.constant 0 : i32
    return %arg0, %c0_i32 : i32, i32
  }
}

module attributes {stable_mosaic.version = 11 : i64} {
  func.func @_agg_kernel(%arg0: i32, %arg1: memref<48x48xf32, #tpu.memory_space<vmem>>, %arg2: memref<48x256xf32, #tpu.memory_space<vmem>>, %arg3: memref<48x256xf32, #tpu.memory_space<vmem>>) attributes {dimension_semantics = [#tpu.dimension_semantics<parallel>], iteration_bounds = array<i64: 2>, scalar_prefetch = 0 : i64, scratch_operands = 0 : i64, tpu.core_type = #tpu.core_type<tc>, window_params = [{pipeline_mode = #tpu.pipeline_mode<synchronous>, transform_indices = @transform_0, window_bounds = array<i64: 48, 48>}, {transform_indices = @transform_1, window_bounds = array<i64: 48, 256>}, {transform_indices = @transform_2, window_bounds = array<i64: 48, 256>}]} {
    %c0 = arith.constant 0 : index
    %c0_0 = arith.constant 0 : index
    %0 = vector.load %arg1[%c0, %c0_0] : memref<48x48xf32, #tpu.memory_space<vmem>>, vector<48x48xf32>
    %c0_1 = arith.constant 0 : index
    %c0_2 = arith.constant 0 : index
    %1 = vector.load %arg2[%c0_1, %c0_2] : memref<48x256xf32, #tpu.memory_space<vmem>>, vector<48x256xf32>
    %cst = arith.constant dense<0.000000e+00> : vector<48x256xf32>
    %2 = tpu.matmul %0, %1, %cst {dimension_numbers = #tpu.dot_dimension_numbers<[1], [0], [0], [1], [0, 0, 1, 1], [], []>} : vector<48x48xf32>, vector<48x256xf32>, vector<48x256xf32> -> vector<48x256xf32>
    %c0_3 = arith.constant 0 : index
    %c0_4 = arith.constant 0 : index
    %3 = vector.load %arg3[%c0_3, %c0_4] : memref<48x256xf32, #tpu.memory_space<vmem>>, vector<48x256xf32>
    tpu.vector_store %arg3[%c0_3, %c0_4], %2 {strides = array<i32>} : memref<48x256xf32, #tpu.memory_space<vmem>>, vector<48x256xf32>,
    return
  }
  func.func @transform_0(%arg0: i32) -> (i32, i32) {
    %c0_i32 = arith.constant 0 : i32
    %c0_i32_0 = arith.constant 0 : i32
    %c0_i32_1 = arith.constant 0 : i32
    return %c0_i32, %c0_i32_0 : i32, i32
  }
  func.func @transform_1(%arg0: i32) -> (i32, i32) {
    %c0_i32 = arith.constant 0 : i32
    %c0_i32_0 = arith.constant 0 : i32
    return %c0_i32, %arg0 : i32, i32
  }
  func.func @transform_2(%arg0: i32) -> (i32, i32) {
    %c0_i32 = arith.constant 0 : i32
    %c0_i32_0 = arith.constant 0 : i32
    return %c0_i32, %arg0 : i32, i32
  }
}

</mosaic_0001>

<llo_original>
// kernel: gcn_operation_forward.2
$region0: #{gcn_operation_forward.2}
  #allocation0 [shape = 'u32[]', space=smem, size = 0x4, offset = 0x4, fixed_abs, tag = 'smem constant byte address 0x4 - core index']
  #allocation1 [shape = 'u32[144,128]{1,0:T(1,128)}', space=vmem, size = 0x12000, scoped, tag = 'internal scratch']
  %s0 = inlined_call_operand.vmem [shape: f32[48,48], index: 0, kind: input, shape index: {}]
  %s1 = inlined_call_operand.vmem [shape: f32[48,512], index: 1, kind: input, shape index: {}]
  %s2 = inlined_call_operand.vmem [shape: f32[48,512], index: 2, kind: output, shape index: {}]
  %s3 = sld [smem:[#allocation0]]
  $region83: #{gcn_operation_forward.2} parent=0
    _
  %s5 = ssub.s32 1, %s3
  %s6 = scalar_select 0, %s5, %s3
  $region1: #{gcn_operation_forward.2} parent=0
    #allocation2 [shape = 'u8[98304]{0}', space=vmem, size = 0x18000, scoped, tag = 'input window, operand 1']
    #allocation3 [shape = 'u8[98304]{0}', space=vmem, size = 0x18000, scoped, tag = 'output window, operand 0']
    loop: start=0, step=1, limit=4
    $region2: #{gcn_operation_forward.2} parent=1 // loop_pre_header
      _
    $region3: #{gcn_operation_forward.2} parent=1 // loop_header
      %s8 = sphi 0, %s12
      %p9 = scmp.ge.s32.totalorder %s8, 4
      %s16 = sphi 0, %s16
      %s18 = sphi 0, %s16
      %s19 = sphi 0, %s18
      %s33 = sphi 0, %s19
      %s39 = sphi 0, %s41
      %s42 = sphi 0, %s39
      %s43 = sphi 0, %s42
      %s59 = sphi 0, %s43
      %s65 = sphi 0, %s67
      %s68 = sphi 0, %s65
      %s69 = sphi 0, %s68
      %s85 = sphi 0, %s69
    $region4: #{gcn_operation_forward.2} parent=1 // loop_header_branch
      %11 = sbr.rel (%p9) target = $region8
    $region5: #{gcn_operation_forward.2} parent=1 // loop_body
      %s13 = ssub.s32 %s8, 1
      %s14 = ssub.s32 %s8, 2
      %s15 = sadd.s32 %s8, 1
      %s17 = sadd.s32 %s16, 1
      %p20 = scmp.eq.s32.totalorder %s8, 1
      %p21 = scmp.ne.s32.totalorder %s16, %s18
      %p22 = scmp.eq.s32.totalorder %s8, 0
      %p23 = por %p21, %p22
      %p24 = scmp.ne.s32.totalorder %s16, %s18
      %p25 = scmp.eq.s32.totalorder %s13, 1
      %p26 = por %p24, %p25
      %p27 = scmp.ne.s32.totalorder %s18, %s19
      %p28 = scmp.eq.s32.totalorder %s13, 0
      %p29 = por %p27, %p28
      %p30 = scmp.ne.s32.totalorder %s18, %s19
      %p31 = scmp.eq.s32.totalorder %s14, 1
      %p32 = por %p30, %p31
      %p34 = scmp.ne.s32.totalorder %s19, %s33
      %p35 = scmp.eq.s32.totalorder %s14, 0
      %p36 = por %p34, %p35
      %s37 = ssub.s32 %s8, %s15
      %p38 = scmp.eq.s32.totalorder %s37, 0
      %s40 = sadd.s32 %s39, 1
      %s41 = scalar_select %p38, %s39, %s40
      %p44 = pneg %p38
      %p45 = scmp.eq.s32.totalorder %s8, 1
      %p46 = por %p44, %p45
      %p47 = scmp.ne.s32.totalorder %s39, %s42
      %p48 = scmp.eq.s32.totalorder %s8, 0
      %p49 = por %p47, %p48
      %p50 = scmp.ne.s32.totalorder %s39, %s42
      %p51 = scmp.eq.s32.totalorder %s13, 1
      %p52 = por %p50, %p51
      %p53 = scmp.ne.s32.totalorder %s42, %s43
      %p54 = scmp.eq.s32.totalorder %s13, 0
      %p55 = por %p53, %p54
      %p56 = scmp.ne.s32.totalorder %s42, %s43
      %p57 = scmp.eq.s32.totalorder %s14, 1
      %p58 = por %p56, %p57
      %p60 = scmp.ne.s32.totalorder %s43, %s59
      %p61 = scmp.eq.s32.totalorder %s14, 0
      %p62 = por %p60, %p61
      %s63 = ssub.s32 %s8, %s15
      %p64 = scmp.eq.s32.totalorder %s63, 0
      %s66 = sadd.s32 %s65, 1
      %s67 = scalar_select %p64, %s65, %s66
      %p70 = pneg %p64
      %p71 = scmp.eq.s32.totalorder %s8, 1
      %p72 = por %p70, %p71
      %p73 = scmp.ne.s32.totalorder %s65, %s68
      %p74 = scmp.eq.s32.totalorder %s8, 0
      %p75 = por %p73, %p74
      %p76 = scmp.ne.s32.totalorder %s65, %s68
      %p77 = scmp.eq.s32.totalorder %s13, 1
      %p78 = por %p76, %p77
      %p79 = scmp.ne.s32.totalorder %s68, %s69
      %p80 = scmp.eq.s32.totalorder %s13, 0
      %p81 = por %p79, %p80
      %p82 = scmp.ne.s32.totalorder %s68, %s69
      %p83 = scmp.eq.s32.totalorder %s14, 1
      %p84 = por %p82, %p83
      %p86 = scmp.ne.s32.totalorder %s69, %s85
      %p87 = scmp.eq.s32.totalorder %s14, 0
      %p88 = por %p86, %p87
      %p89 = scmp.le.s32.totalorder 1, %s8
      %p90 = scmp.lt.s32.totalorder %s8, 3
      %p91 = pnand %p89, %p90
      %p92 = pneg %p91
      // Predicated region
      $region9: #{gcn_operation_forward.2} parent=5 // pred_check
        _
      $region10: #{gcn_operation_forward.2} parent=5 // pred_check_branch
        %94 = sbr.rel (%p91) target = $region12
      $region11: #{gcn_operation_forward.2} parent=5 // pred_region
        %s95 = ssub.s32 %s8, 1
        // Predicated region
        $region13: #{gcn_operation_forward.2} parent=11 // pred_check
          %p96 = pneg %p29
        $region14: #{gcn_operation_forward.2} parent=11 // pred_check_branch
          %98 = sbr.rel (%p96) target = $region16
        $region15: #{gcn_operation_forward.2} parent=11 // pred_region
          _
        $region16: #{gcn_operation_forward.2} parent=11 // pred_fallthru
          _
      $region12: #{gcn_operation_forward.2} parent=5 // pred_fallthru
        _
      %p99 = scmp.lt.s32.totalorder %s8, 2
      // Predicated region
      $region17: #{gcn_operation_forward.2} parent=5 // pred_check
        %p100 = pneg %p99
      $region18: #{gcn_operation_forward.2} parent=5 // pred_check_branch
        %102 = sbr.rel (%p100) target = $region20
      $region19: #{gcn_operation_forward.2} parent=5 // pred_region
        // Predicated region
        $region21: #{gcn_operation_forward.2} parent=19 // pred_check
          %p103 = pneg %p49
        $region22: #{gcn_operation_forward.2} parent=19 // pred_check_branch
          %105 = sbr.rel (%p103) target = $region24
        $region23: #{gcn_operation_forward.2} parent=19 // pred_region
          %s106 = sand.u32 %s39, 1
          %s107 = sand.u32 %s39, 1
          %s108 = smul.addr %s107, 96
          %s109 = scalar_lea.vmem [#allocation2], %s108
          %s110 = smul.u32 2, %s8
          %s111 = smul.addr %s110, 8
          %s112 = scalar_lea.vmem %s1, %s111
          // Predicated region
          $region25: #{gcn_operation_forward.2} parent=23 // pred_check
            _
          $region26: #{gcn_operation_forward.2} parent=23 // pred_check_branch
            %114 = sbr.rel (0) target = $region28
          $region27: #{gcn_operation_forward.2} parent=23 // pred_region
            // Predicated region
            $region29: #{gcn_operation_forward.2} parent=27 // pred_check
              _
            $region30: #{gcn_operation_forward.2} parent=27 // pred_check_branch
              %116 = sbr.rel (0) target = $region32
            $region31: #{gcn_operation_forward.2} parent=27 // pred_region
              loop: start=0, step=1, limit=1
              $region33: #{gcn_operation_forward.2} parent=31 // loop_pre_header
                _
              $region34: #{gcn_operation_forward.2} parent=31 // loop_header
                %s118 = sphi 0, %s122
                %p119 = scmp.ge.s32.totalorder %s118, 1
                %s123 = sphi %s112, %s112
                %s124 = sphi %s109, %s109
              $region35: #{gcn_operation_forward.2} parent=31 // loop_header_branch
                %121 = sbr.rel (%p119) target = $region39
              $region36: #{gcn_operation_forward.2} parent=31 // loop_body
                %v125 = vld [vmem:[%s123] sm:$0xff]
                %126 = vst [vmem:[%s124] sm:$0xff] %v125
                %v127 = vld [vmem:[%s123 + $0x8] sm:$0xff]
                %128 = vst [vmem:[%s124 + $0x8] sm:$0xff] %v127
                %v129 = vld [vmem:[%s123 + $0x20] sm:$0xff]
                %130 = vst [vmem:[%s124 + $0x10] sm:$0xff] %v129
                %v131 = vld [vmem:[%s123 + $0x28] sm:$0xff]
                %132 = vst [vmem:[%s124 + $0x18] sm:$0xff] %v131
                %v133 = vld [vmem:[%s123 + $0x40] sm:$0xff]
                %134 = vst [vmem:[%s124 + $0x20] sm:$0xff] %v133
                %v135 = vld [vmem:[%s123 + $0x48] sm:$0xff]
                %136 = vst [vmem:[%s124 + $0x28] sm:$0xff] %v135
                %v137 = vld [vmem:[%s123 + $0x60] sm:$0xff]
                %138 = vst [vmem:[%s124 + $0x30] sm:$0xff] %v137
                %v139 = vld [vmem:[%s123 + $0x68] sm:$0xff]
                %140 = vst [vmem:[%s124 + $0x38] sm:$0xff] %v139
                %v141 = vld [vmem:[%s123 + $0x80] sm:$0xff]
                %142 = vst [vmem:[%s124 + $0x40] sm:$0xff] %v141
                %v143 = vld [vmem:[%s123 + $0x88] sm:$0xff]
                %144 = vst [vmem:[%s124 + $0x48] sm:$0xff] %v143
                %v145 = vld [vmem:[%s123 + $0xa0] sm:$0xff]
                %146 = vst [vmem:[%s124 + $0x50] sm:$0xff] %v145
                %v147 = vld [vmem:[%s123 + $0xa8] sm:$0xff]
                %148 = vst [vmem:[%s124 + $0x58] sm:$0xff] %v147
              $region37: #{gcn_operation_forward.2} parent=31 // loop_footer
                %s122 = sadd.s32 1, %s118
              $region38: #{gcn_operation_forward.2} parent=31 // loop_footer_branch
                %117 = sbr.rel target = $region34
              $region39: #{gcn_operation_forward.2} parent=31 // loop_exit
                _
            $region32: #{gcn_operation_forward.2} parent=27 // pred_fallthru
              _
            // Predicated region
            $region40: #{gcn_operation_forward.2} parent=27 // pred_check
              _
            $region41: #{gcn_operation_forward.2} parent=27 // pred_check_branch
              %150 = sbr.rel target = $region43
            $region42: #{gcn_operation_forward.2} parent=27 // pred_region
              _
            $region43: #{gcn_operation_forward.2} parent=27 // pred_fallthru
              _
          $region28: #{gcn_operation_forward.2} parent=23 // pred_fallthru
            _
          %151 = vnop
        $region24: #{gcn_operation_forward.2} parent=19 // pred_fallthru
          _
      $region20: #{gcn_operation_forward.2} parent=5 // pred_fallthru
        _
      %p152 = scmp.le.s32.totalorder 1, %s8
      %p153 = scmp.lt.s32.totalorder %s8, 3
      %p154 = pnand %p152, %p153
      %p155 = pneg %p154
      // Predicated region
      $region44: #{gcn_operation_forward.2} parent=5 // pred_check
        _
      $region45: #{gcn_operation_forward.2} parent=5 // pred_check_branch
        %157 = sbr.rel (%p154) target = $region47
      $region46: #{gcn_operation_forward.2} parent=5 // pred_region
        %s158 = ssub.s32 %s8, 1
        %s159 = sand.u32 %s42, 1
        %s160 = sand.u32 %s42, 1
        %s161 = smul.addr %s160, 96
        %s162 = scalar_lea.vmem [#allocation2], %s161
        // Predicated region
        $region48: #{gcn_operation_forward.2} parent=46 // pred_check
          %p163 = pneg %p55
        $region49: #{gcn_operation_forward.2} parent=46 // pred_check_branch
          %165 = sbr.rel (%p163) target = $region51
        $region50: #{gcn_operation_forward.2} parent=46 // pred_region
          _
        $region51: #{gcn_operation_forward.2} parent=46 // pred_fallthru
          _
        %p166 = pneg %p29
        %p167 = pneg %p26
        %s168 = sand.u32 %s42, 1
        %s169 = sand.u32 %s42, 1
        %s170 = smul.addr %s169, 96
        %s171 = scalar_lea.vmem [#allocation2], %s170
        %p172 = pneg %p55
        %p173 = pneg %p52
        %p174 = pneg %p81
        %p175 = pneg %p78
        %s176 = sand.u32 %s68, 1
        %s177 = sand.u32 %s68, 1
        %s178 = smul.addr %s177, 96
        %s179 = scalar_lea.vmem [#allocation3], %s178
        %s180 = smul.u32 2, %s13
        %s181 = smul.u32 2, %s13
        %v182 = vld [vmem:[%s0] sm:$0xff]
        %v183 = vld [vmem:[%s0 + $0x8] sm:$0xff]
        %v184 = vld [vmem:[%s0 + $0x10] sm:$0xff]
        %v185 = vld [vmem:[%s0 + $0x18] sm:$0xff]
        %v186 = vld [vmem:[%s0 + $0x20] sm:$0xff]
        %v187 = vld [vmem:[%s0 + $0x28] sm:$0xff]
        %v188 = vld [vmem:[%s162] sm:$0xff]
        %v189 = vld [vmem:[%s162 + $0x8] sm:$0xff]
        %v190 = vld [vmem:[%s162 + $0x10] sm:$0xff]
        %v191 = vld [vmem:[%s162 + $0x18] sm:$0xff]
        %v192 = vld [vmem:[%s162 + $0x20] sm:$0xff]
        %v193 = vld [vmem:[%s162 + $0x28] sm:$0xff]
        %v194 = vld [vmem:[%s162 + $0x30] sm:$0xff]
        %v195 = vld [vmem:[%s162 + $0x38] sm:$0xff]
        %v196 = vld [vmem:[%s162 + $0x40] sm:$0xff]
        %v197 = vld [vmem:[%s162 + $0x48] sm:$0xff]
        %v198 = vld [vmem:[%s162 + $0x50] sm:$0xff]
        %v199 = vld [vmem:[%s162 + $0x58] sm:$0xff]
        %vm200 = vcmask 392192
        %v202 = vsel %vm200, %v182, 0
        %v205 = vsel %vm200, %v183, 0
        %v208 = vsel %vm200, %v184, 0
        %v211 = vsel %vm200, %v185, 0
        %v214 = vsel %vm200, %v186, 0
        %v217 = vsel %vm200, %v187, 0
        %219 = vmatprep.subr.mxu0 %v189
        %220 = vmatpush1.msra.mxu0 %v188
        %221 = vmatprep.subr.mxu0 %v191
        %222 = vmatpush1.msra.mxu0 %v190
        %223 = vmatprep.subr.mxu0 %v193
        %224 = vmatpush1.msra.mxu0 %v192
        %225 = vmatprep.subr.mxu0 %v195
        %226 = vmatpush1.msra.mxu0 %v194
        %227 = vmatprep.subr.mxu0 %v197
        %228 = vmatpush1.msra.mxu0 %v196
        %229 = vmatprep.subr.mxu0 %v199
        %230 = vmatpush1.msra.mxu0 %v198
        %231 = vmatprep.subr.mxu0 0.0
        %232 = vmatpush1.msra.mxu0 0.0
        %233 = vmatprep.subr.mxu0 0.0
        %234 = vmatpush1.msra.mxu0 0.0
        %235 = vmatprep.subr.mxu0 0.0
        %236 = vmatpush1.msra.mxu0 0.0
        %237 = vmatprep.subr.mxu0 0.0
        %238 = vmatpush1.msra.mxu0 0.0
        %239 = vmatprep.subr.mxu0 0.0
        %240 = vmatpush1.msra.mxu0 0.0
        %241 = vmatprep.subr.mxu0 0.0
        %242 = vmatpush1.msra.mxu0 0.0
        %243 = vmatprep.subr.mxu0 0.0
        %244 = vmatpush1.msra.mxu0 0.0
        %245 = vmatprep.subr.mxu0 0.0
        %246 = vmatpush1.msra.mxu0 0.0
        %247 = vmatprep.subr.mxu0 0.0
        %248 = vmatpush1.msra.mxu0 0.0
        %249 = vmatprep.subr.mxu0 0.0
        %250 = vmatpush1.msra.mxu0 0.0
        %251 = vmatprep.subr.mxu0 0.0
        %252 = vmatpush1.msra.mxu0 0.0
        %253 = vmatprep.subr.mxu0 0.0
        %254 = vmatpush1.msra.mxu0 0.0
        %255 = vmatprep.subr.mxu0 0.0
        %256 = vmatpush1.msra.mxu0 0.0
        %257 = vmatprep.subr.mxu0 0.0
        %258 = vmatpush1.msra.mxu0 0.0
        %259 = vmatprep.subr.mxu0 0.0
        %260 = vmatpush1.msra.mxu0 0.0
        %261 = vmatprep.subr.mxu0 0.0
        %262 = vmatpush1.msra.mxu0 0.0
        %263 = vmatprep.subr.mxu0 0.0
        %264 = vmatpush1.msra.mxu0 0.0
        %265 = vmatprep.subr.mxu0 0.0
        %266 = vmatpush1.msra.mxu0 0.0
        %267 = vmatprep.subr.mxu0 0.0
        %268 = vmatpush1.msra.mxu0 0.0
        %269 = vmatprep.subr.mxu0 0.0
        %270 = vmatpush1.msra.mxu0 0.0
        %271 = vmatprep.subr.mxu0 0.0
        %272 = vmatpush1.msra.mxu0 0.0
        %273 = vmatprep.subr.mxu0 0.0
        %274 = vmatpush1.msra.mxu0 0.0
        %275 = vmatprep.subr.mxu0 0.0
        %276 = vmatpush1.msra.mxu0 0.0
        %277 = vmatprep.subr.mxu0 0.0
        %278 = vmatpush1.msra.mxu0 0.0
        %279 = vmatprep.subr.mxu0 0.0
        %280 = vmatpush1.msra.mxu0 0.0
        %281 = vmatprep.subr.mxu0 0.0
        %282 = vmatpush1.msra.mxu0 0.0
        %283 = vmatprep.mubr.f32.mxu0 0.0
        %284 = vmatmul.mubr.f32.gmra.mrb[0].mxu0 %v202
        %v285 = vpop.f32.mrb[0].mxu0
        %v286 = vadd.f32 0.0, %v285
        %v287 = vpop.f32.mrb[0].mxu0
        %v288 = vadd.f32 0.0, %v287
        %289 = vmatprep.mubr.f32.mxu0 0.0
        %290 = vmatmul.mubr.f32.gmra.mrb[0].mxu0 %v205
        %v291 = vpop.f32.mrb[0].mxu0
        %v292 = vadd.f32 0.0, %v291
        %v293 = vpop.f32.mrb[0].mxu0
        %v294 = vadd.f32 0.0, %v293
        %295 = vmatprep.mubr.f32.mxu0 0.0
        %296 = vmatmul.mubr.f32.gmra.mrb[0].mxu0 %v208
        %v297 = vpop.f32.mrb[0].mxu0
        %v298 = vadd.f32 0.0, %v297
        %v299 = vpop.f32.mrb[0].mxu0
        %v300 = vadd.f32 0.0, %v299
        %301 = vmatprep.mubr.f32.mxu0 0.0
        %302 = vmatmul.mubr.f32.gmra.mrb[0].mxu0 %v211
        %v303 = vpop.f32.mrb[0].mxu0
        %v304 = vadd.f32 0.0, %v303
        %v305 = vpop.f32.mrb[0].mxu0
        %v306 = vadd.f32 0.0, %v305
        %307 = vmatprep.mubr.f32.mxu0 0.0
        %308 = vmatmul.mubr.f32.gmra.mrb[0].mxu0 %v214
        %v309 = vpop.f32.mrb[0].mxu0
        %v310 = vadd.f32 0.0, %v309
        %v311 = vpop.f32.mrb[0].mxu0
        %v312 = vadd.f32 0.0, %v311
        %313 = vmatprep.mubr.f32.mxu0 0.0
        %314 = vmatmul.mubr.f32.gmra.mrb[0].mxu0 %v217
        %v315 = vpop.f32.mrb[0].mxu0
        %v316 = vadd.f32 0.0, %v315
        %v317 = vpop.f32.mrb[0].mxu0
        %v318 = vadd.f32 0.0, %v317
        %319 = vdwg.mxu0
        %320 = vst [vmem:[%s179] sm:$0xff] %v286
        %321 = vst [vmem:[%s179 + $0x8] sm:$0xff] %v288
        %322 = vst [vmem:[%s179 + $0x10] sm:$0xff] %v292
        %323 = vst [vmem:[%s179 + $0x18] sm:$0xff] %v294
        %324 = vst [vmem:[%s179 + $0x20] sm:$0xff] %v298
        %325 = vst [vmem:[%s179 + $0x28] sm:$0xff] %v300
        %326 = vst [vmem:[%s179 + $0x30] sm:$0xff] %v304
        %327 = vst [vmem:[%s179 + $0x38] sm:$0xff] %v306
        %328 = vst [vmem:[%s179 + $0x40] sm:$0xff] %v310
        %329 = vst [vmem:[%s179 + $0x48] sm:$0xff] %v312
        %330 = vst [vmem:[%s179 + $0x50] sm:$0xff] %v316
        %331 = vst [vmem:[%s179 + $0x58] sm:$0xff] %v318
        %s332 = sand.u32 %s68, 1
        %s333 = sand.u32 %s68, 1
        %s334 = smul.addr %s333, 96
        %s335 = scalar_lea.vmem [#allocation3], %s334
        // Predicated region
        $region52: #{gcn_operation_forward.2} parent=46 // pred_check
          %p336 = pneg %p78
        $region53: #{gcn_operation_forward.2} parent=46 // pred_check_branch
          %338 = sbr.rel (%p336) target = $region55
        $region54: #{gcn_operation_forward.2} parent=46 // pred_region
          %s339 = smul.u32 2, %s13
          %s340 = smul.addr %s339, 8
          %s341 = scalar_lea.vmem %s2, %s340
          // Predicated region
          $region56: #{gcn_operation_forward.2} parent=54 // pred_check
            _
          $region57: #{gcn_operation_forward.2} parent=54 // pred_check_branch
            %343 = sbr.rel (0) target = $region59
          $region58: #{gcn_operation_forward.2} parent=54 // pred_region
            // Predicated region
            $region60: #{gcn_operation_forward.2} parent=58 // pred_check
              _
            $region61: #{gcn_operation_forward.2} parent=58 // pred_check_branch
              %345 = sbr.rel (0) target = $region63
            $region62: #{gcn_operation_forward.2} parent=58 // pred_region
              loop: start=0, step=1, limit=1
              $region64: #{gcn_operation_forward.2} parent=62 // loop_pre_header
                _
              $region65: #{gcn_operation_forward.2} parent=62 // loop_header
                %s347 = sphi 0, %s351
                %p348 = scmp.ge.s32.totalorder %s347, 1
                %s352 = sphi %s335, %s335
                %s353 = sphi %s341, %s341
              $region66: #{gcn_operation_forward.2} parent=62 // loop_header_branch
                %350 = sbr.rel (%p348) target = $region70
              $region67: #{gcn_operation_forward.2} parent=62 // loop_body
                %v354 = vld [vmem:[%s352] sm:$0xff]
                %355 = vst [vmem:[%s353] sm:$0xff] %v354
                %v356 = vld [vmem:[%s352 + $0x8] sm:$0xff]
                %357 = vst [vmem:[%s353 + $0x8] sm:$0xff] %v356
                %v358 = vld [vmem:[%s352 + $0x10] sm:$0xff]
                %359 = vst [vmem:[%s353 + $0x20] sm:$0xff] %v358
                %v360 = vld [vmem:[%s352 + $0x18] sm:$0xff]
                %361 = vst [vmem:[%s353 + $0x28] sm:$0xff] %v360
                %v362 = vld [vmem:[%s352 + $0x20] sm:$0xff]
                %363 = vst [vmem:[%s353 + $0x40] sm:$0xff] %v362
                %v364 = vld [vmem:[%s352 + $0x28] sm:$0xff]
                %365 = vst [vmem:[%s353 + $0x48] sm:$0xff] %v364
                %v366 = vld [vmem:[%s352 + $0x30] sm:$0xff]
                %367 = vst [vmem:[%s353 + $0x60] sm:$0xff] %v366
                %v368 = vld [vmem:[%s352 + $0x38] sm:$0xff]
                %369 = vst [vmem:[%s353 + $0x68] sm:$0xff] %v368
                %v370 = vld [vmem:[%s352 + $0x40] sm:$0xff]
                %371 = vst [vmem:[%s353 + $0x80] sm:$0xff] %v370
                %v372 = vld [vmem:[%s352 + $0x48] sm:$0xff]
                %373 = vst [vmem:[%s353 + $0x88] sm:$0xff] %v372
                %v374 = vld [vmem:[%s352 + $0x50] sm:$0xff]
                %375 = vst [vmem:[%s353 + $0xa0] sm:$0xff] %v374
                %v376 = vld [vmem:[%s352 + $0x58] sm:$0xff]
                %377 = vst [vmem:[%s353 + $0xa8] sm:$0xff] %v376
              $region68: #{gcn_operation_forward.2} parent=62 // loop_footer
                %s351 = sadd.s32 1, %s347
              $region69: #{gcn_operation_forward.2} parent=62 // loop_footer_branch
                %346 = sbr.rel target = $region65
              $region70: #{gcn_operation_forward.2} parent=62 // loop_exit
                _
            $region63: #{gcn_operation_forward.2} parent=58 // pred_fallthru
              _
            // Predicated region
            $region71: #{gcn_operation_forward.2} parent=58 // pred_check
              _
            $region72: #{gcn_operation_forward.2} parent=58 // pred_check_branch
              %379 = sbr.rel target = $region74
            $region73: #{gcn_operation_forward.2} parent=58 // pred_region
              _
            $region74: #{gcn_operation_forward.2} parent=58 // pred_fallthru
              _
          $region59: #{gcn_operation_forward.2} parent=54 // pred_fallthru
            _
          %380 = vnop
        $region55: #{gcn_operation_forward.2} parent=46 // pred_fallthru
          _
      $region47: #{gcn_operation_forward.2} parent=5 // pred_fallthru
        _
      %p381 = scmp.le.s32.totalorder 2, %s8
      // Predicated region
      $region75: #{gcn_operation_forward.2} parent=5 // pred_check
        %p382 = pneg %p381
      $region76: #{gcn_operation_forward.2} parent=5 // pred_check_branch
        %384 = sbr.rel (%p382) target = $region78
      $region77: #{gcn_operation_forward.2} parent=5 // pred_region
        %s385 = ssub.s32 %s8, 2
        // Predicated region
        $region79: #{gcn_operation_forward.2} parent=77 // pred_check
          %p386 = pneg %p84
        $region80: #{gcn_operation_forward.2} parent=77 // pred_check_branch
          %388 = sbr.rel (%p386) target = $region82
        $region81: #{gcn_operation_forward.2} parent=77 // pred_region
          %s389 = sand.u32 %s69, 1
          %s390 = sand.u32 %s69, 1
          %s391 = smul.addr %s390, 96
          %s392 = scalar_lea.vmem [#allocation3], %s391
        $region82: #{gcn_operation_forward.2} parent=77 // pred_fallthru
          _
      $region78: #{gcn_operation_forward.2} parent=5 // pred_fallthru
        _
    $region6: #{gcn_operation_forward.2} parent=1 // loop_footer
      %s12 = sadd.s32 1, %s8
    $region7: #{gcn_operation_forward.2} parent=1 // loop_footer_branch
      %7 = sbr.rel target = $region3
    $region8: #{gcn_operation_forward.2} parent=1 // loop_exit
      _

// kernel: gcn_operation_forward.3
$region0: #{gcn_operation_forward.3}
  #allocation0 [shape = 'u32[]', space=smem, size = 0x4, offset = 0x4, fixed_abs, tag = 'smem constant byte address 0x4 - core index']
  #allocation1 [shape = 'u32[144,128]{1,0:T(1,128)}', space=vmem, size = 0x12000, scoped, tag = 'internal scratch']
  %s0 = inlined_call_operand.vmem [shape: f32[768,32], index: 0, kind: input, shape index: {}]
  %s1 = inlined_call_operand.vmem [shape: f32[32,64], index: 1, kind: input, shape index: {}]
  %s2 = inlined_call_operand.vmem [shape: f32[1,64], index: 2, kind: input, shape index: {}]
  %s3 = inlined_call_operand.hbm [shape: f32[768,64], index: 3, kind: output, shape index: {}]
  %s4 = sld [smem:[#allocation0]]
  $region45: #{gcn_operation_forward.3} parent=0
    _
  %s6 = ssub.s32 1, %s4
  %s7 = scalar_select 0, %s6, %s4
  $region1: #{gcn_operation_forward.3} parent=0
    #allocation2 [shape = 'u8[393216]{0}', space=vmem, size = 0x60000, scoped, tag = 'output window, operand 0']
    #allocation3 [shape = 's32[2]{0}', space=sflag, size = 0x8, scoped, tag = 'scoped memory for gcn_operation_forward.3']
    %8 = vsyncpa [#allocation3], 0
    %s9 = scalar_lea.sflag [#allocation3], 1
    %10 = vsyncpa %s9, 0
    loop: start=0, step=1, limit=4
    $region2: #{gcn_operation_forward.3} parent=1 // loop_pre_header
      _
    $region3: #{gcn_operation_forward.3} parent=1 // loop_header
      %s12 = sphi 0, %s16
      %p13 = scmp.ge.s32.totalorder %s12, 4
      %s22 = sphi 0, %s24
      %s25 = sphi 0, %s22
      %s26 = sphi 0, %s25
      %s42 = sphi 0, %s26
      %s46 = sphi 0, %s46
      %s48 = sphi 0, %s46
      %s49 = sphi 0, %s48
      %s63 = sphi 0, %s49
      %s67 = sphi 0, %s67
      %s69 = sphi 0, %s67
      %s70 = sphi 0, %s69
      %s84 = sphi 0, %s70
      %s90 = sphi 0, %s92
      %s93 = sphi 0, %s90
      %s94 = sphi 0, %s93
      %s110 = sphi 0, %s94
    $region4: #{gcn_operation_forward.3} parent=1 // loop_header_branch
      %15 = sbr.rel (%p13) target = $region8
    $region5: #{gcn_operation_forward.3} parent=1 // loop_body
      %s17 = ssub.s32 %s12, 1
      %s18 = ssub.s32 %s12, 2
      %s19 = sadd.s32 %s12, 1
      %s20 = ssub.s32 %s12, %s19
      %p21 = scmp.eq.s32.totalorder %s20, 0
      %s23 = sadd.s32 %s22, 1
      %s24 = scalar_select %p21, %s22, %s23
      %p27 = pneg %p21
      %p28 = scmp.eq.s32.totalorder %s12, 1
      %p29 = por %p27, %p28
      %p30 = scmp.ne.s32.totalorder %s22, %s25
      %p31 = scmp.eq.s32.totalorder %s12, 0
      %p32 = por %p30, %p31
      %p33 = scmp.ne.s32.totalorder %s22, %s25
      %p34 = scmp.eq.s32.totalorder %s17, 1
      %p35 = por %p33, %p34
      %p36 = scmp.ne.s32.totalorder %s25, %s26
      %p37 = scmp.eq.s32.totalorder %s17, 0
      %p38 = por %p36, %p37
      %p39 = scmp.ne.s32.totalorder %s25, %s26
      %p40 = scmp.eq.s32.totalorder %s18, 1
      %p41 = por %p39, %p40
      %p43 = scmp.ne.s32.totalorder %s26, %s42
      %p44 = scmp.eq.s32.totalorder %s18, 0
      %p45 = por %p43, %p44
      %s47 = sadd.s32 %s46, 1
      %p50 = scmp.eq.s32.totalorder %s12, 1
      %p51 = scmp.ne.s32.totalorder %s46, %s48
      %p52 = scmp.eq.s32.totalorder %s12, 0
      %p53 = por %p51, %p52
      %p54 = scmp.ne.s32.totalorder %s46, %s48
      %p55 = scmp.eq.s32.totalorder %s17, 1
      %p56 = por %p54, %p55
      %p57 = scmp.ne.s32.totalorder %s48, %s49
      %p58 = scmp.eq.s32.totalorder %s17, 0
      %p59 = por %p57, %p58
      %p60 = scmp.ne.s32.totalorder %s48, %s49
      %p61 = scmp.eq.s32.totalorder %s18, 1
      %p62 = por %p60, %p61
      %p64 = scmp.ne.s32.totalorder %s49, %s63
      %p65 = scmp.eq.s32.totalorder %s18, 0
      %p66 = por %p64, %p65
      %s68 = sadd.s32 %s67, 1
      %p71 = scmp.eq.s32.totalorder %s12, 1
      %p72 = scmp.ne.s32.totalorder %s67, %s69
      %p73 = scmp.eq.s32.totalorder %s12, 0
      %p74 = por %p72, %p73
      %p75 = scmp.ne.s32.totalorder %s67, %s69
      %p76 = scmp.eq.s32.totalorder %s17, 1
      %p77 = por %p75, %p76
      %p78 = scmp.ne.s32.totalorder %s69, %s70
      %p79 = scmp.eq.s32.totalorder %s17, 0
      %p80 = por %p78, %p79
      %p81 = scmp.ne.s32.totalorder %s69, %s70
      %p82 = scmp.eq.s32.totalorder %s18, 1
      %p83 = por %p81, %p82
      %p85 = scmp.ne.s32.totalorder %s70, %s84
      %p86 = scmp.eq.s32.totalorder %s18, 0
      %p87 = por %p85, %p86
      %s88 = ssub.s32 %s12, %s19
      %p89 = scmp.eq.s32.totalorder %s88, 0
      %s91 = sadd.s32 %s90, 1
      %s92 = scalar_select %p89, %s90, %s91
      %p95 = pneg %p89
      %p96 = scmp.eq.s32.totalorder %s12, 1
      %p97 = por %p95, %p96
      %p98 = scmp.ne.s32.totalorder %s90, %s93
      %p99 = scmp.eq.s32.totalorder %s12, 0
      %p100 = por %p98, %p99
      %p101 = scmp.ne.s32.totalorder %s90, %s93
      %p102 = scmp.eq.s32.totalorder %s17, 1
      %p103 = por %p101, %p102
      %p104 = scmp.ne.s32.totalorder %s93, %s94
      %p105 = scmp.eq.s32.totalorder %s17, 0
      %p106 = por %p104, %p105
      %p107 = scmp.ne.s32.totalorder %s93, %s94
      %p108 = scmp.eq.s32.totalorder %s18, 1
      %p109 = por %p107, %p108
      %p111 = scmp.ne.s32.totalorder %s94, %s110
      %p112 = scmp.eq.s32.totalorder %s18, 0
      %p113 = por %p111, %p112
      %p114 = scmp.le.s32.totalorder 1, %s12
      %p115 = scmp.lt.s32.totalorder %s12, 3
      %p116 = pnand %p114, %p115
      %p117 = pneg %p116
      // Predicated region
      $region9: #{gcn_operation_forward.3} parent=5 // pred_check
        _
      $region10: #{gcn_operation_forward.3} parent=5 // pred_check_branch
        %119 = sbr.rel (%p116) target = $region12
      $region11: #{gcn_operation_forward.3} parent=5 // pred_region
        %s120 = ssub.s32 %s12, 1
        // Predicated region
        $region13: #{gcn_operation_forward.3} parent=11 // pred_check
          %p121 = pneg %p59
        $region14: #{gcn_operation_forward.3} parent=11 // pred_check_branch
          %123 = sbr.rel (%p121) target = $region16
        $region15: #{gcn_operation_forward.3} parent=11 // pred_region
          _
        $region16: #{gcn_operation_forward.3} parent=11 // pred_fallthru
          _
        // Predicated region
        $region17: #{gcn_operation_forward.3} parent=11 // pred_check
          %p124 = pneg %p80
        $region18: #{gcn_operation_forward.3} parent=11 // pred_check_branch
          %126 = sbr.rel (%p124) target = $region20
        $region19: #{gcn_operation_forward.3} parent=11 // pred_region
          _
        $region20: #{gcn_operation_forward.3} parent=11 // pred_fallthru
          _
      $region12: #{gcn_operation_forward.3} parent=5 // pred_fallthru
        _
      %p127 = scmp.lt.s32.totalorder %s12, 2
      // Predicated region
      $region21: #{gcn_operation_forward.3} parent=5 // pred_check
        %p128 = pneg %p127
      $region22: #{gcn_operation_forward.3} parent=5 // pred_check_branch
        %130 = sbr.rel (%p128) target = $region24
      $region23: #{gcn_operation_forward.3} parent=5 // pred_region
        // Predicated region
        $region25: #{gcn_operation_forward.3} parent=23 // pred_check
          %p131 = pneg %p32
        $region26: #{gcn_operation_forward.3} parent=23 // pred_check_branch
          %133 = sbr.rel (%p131) target = $region28
        $region27: #{gcn_operation_forward.3} parent=23 // pred_region
          %s134 = smul.u32 48, %s12
          %p135 = scmp.lt.s32.totalorder %s134, 95
          %s136 = scalar_select %p135, %s134, 95
          %s137 = smul.addr %s136, 8
          %s138 = scalar_lea.vmem %s0, %s137
          %s139 = smul.u32 48, %s12
        $region28: #{gcn_operation_forward.3} parent=23 // pred_fallthru
          _
      $region24: #{gcn_operation_forward.3} parent=5 // pred_fallthru
        _
      %p140 = scmp.le.s32.totalorder 1, %s12
      %p141 = scmp.lt.s32.totalorder %s12, 3
      %p142 = pnand %p140, %p141
      %p143 = pneg %p142
      // Predicated region
      $region29: #{gcn_operation_forward.3} parent=5 // pred_check
        _
      $region30: #{gcn_operation_forward.3} parent=5 // pred_check_branch
        %145 = sbr.rel (%p142) target = $region32
      $region31: #{gcn_operation_forward.3} parent=5 // pred_region
        %s146 = ssub.s32 %s12, 1
        %s147 = smul.u32 48, %s17
        %p148 = scmp.lt.s32.totalorder %s147, 95
        %s149 = scalar_select %p148, %s147, 95
        %s150 = smul.addr %s149, 8
        %s151 = scalar_lea.vmem %s0, %s150
        %p152 = pneg %p38
        %p153 = pneg %p35
        %p154 = pneg %p59
        %p155 = pneg %p56
        %p156 = pneg %p80
        %p157 = pneg %p77
        %p158 = pneg %p106
        %p159 = pneg %p103
        %s160 = sand.u32 %s93, 1
        %s161 = scalar_lea.sflag [#allocation3], %s160
        %s162 = sand.u32 %s93, 1
        %s163 = smul.addr %s162, 384
        %s164 = scalar_lea.vmem [#allocation2], %s163
        %s165 = smul.u32 48, %s17
        %p166 = scmp.lt.s32.totalorder %s165, 95
        %s167 = scalar_select %p166, %s165, 95
        %s168 = smul.addr %s167, 8
        %s169 = scalar_lea.vmem %s0, %s168
        %s170 = smul.u32 48, %s17
        %s171 = smul.u32 48, %s17
        %v172 = vld [vmem:[%s169] sm:$0xff]
        %v173 = vld [vmem:[%s169 + $0x8] sm:$0xff]
        %v174 = vld [vmem:[%s169 + $0x10] sm:$0xff]
        %v175 = vld [vmem:[%s169 + $0x18] sm:$0xff]
        %v176 = vld [vmem:[%s169 + $0x20] sm:$0xff]
        %v177 = vld [vmem:[%s169 + $0x28] sm:$0xff]
        %v178 = vld [vmem:[%s169 + $0x30] sm:$0xff]
        %v179 = vld [vmem:[%s169 + $0x38] sm:$0xff]
        %v180 = vld [vmem:[%s169 + $0x40] sm:$0xff]
        %v181 = vld [vmem:[%s169 + $0x48] sm:$0xff]
        %v182 = vld [vmem:[%s169 + $0x50] sm:$0xff]
        %v183 = vld [vmem:[%s169 + $0x58] sm:$0xff]
        %v184 = vld [vmem:[%s169 + $0x60] sm:$0xff]
        %v185 = vld [vmem:[%s169 + $0x68] sm:$0xff]
        %v186 = vld [vmem:[%s169 + $0x70] sm:$0xff]
        %v187 = vld [vmem:[%s169 + $0x78] sm:$0xff]
        %v188 = vld [vmem:[%s169 + $0x80] sm:$0xff]
        %v189 = vld [vmem:[%s169 + $0x88] sm:$0xff]
        %v190 = vld [vmem:[%s169 + $0x90] sm:$0xff]
        %v191 = vld [vmem:[%s169 + $0x98] sm:$0xff]
        %v192 = vld [vmem:[%s169 + $0xa0] sm:$0xff]
        %v193 = vld [vmem:[%s169 + $0xa8] sm:$0xff]
        %v194 = vld [vmem:[%s169 + $0xb0] sm:$0xff]
        %v195 = vld [vmem:[%s169 + $0xb8] sm:$0xff]
        %v196 = vld [vmem:[%s169 + $0xc0] sm:$0xff]
        %v197 = vld [vmem:[%s169 + $0xc8] sm:$0xff]
        %v198 = vld [vmem:[%s169 + $0xd0] sm:$0xff]
        %v199 = vld [vmem:[%s169 + $0xd8] sm:$0xff]
        %v200 = vld [vmem:[%s169 + $0xe0] sm:$0xff]
        %v201 = vld [vmem:[%s169 + $0xe8] sm:$0xff]
        %v202 = vld [vmem:[%s169 + $0xf0] sm:$0xff]
        %v203 = vld [vmem:[%s169 + $0xf8] sm:$0xff]
        %v204 = vld [vmem:[%s169 + $0x100] sm:$0xff]
        %v205 = vld [vmem:[%s169 + $0x108] sm:$0xff]
        %v206 = vld [vmem:[%s169 + $0x110] sm:$0xff]
        %v207 = vld [vmem:[%s169 + $0x118] sm:$0xff]
        %v208 = vld [vmem:[%s169 + $0x120] sm:$0xff]
        %v209 = vld [vmem:[%s169 + $0x128] sm:$0xff]
        %v210 = vld [vmem:[%s169 + $0x130] sm:$0xff]
        %v211 = vld [vmem:[%s169 + $0x138] sm:$0xff]
        %v212 = vld [vmem:[%s169 + $0x140] sm:$0xff]
        %v213 = vld [vmem:[%s169 + $0x148] sm:$0xff]
        %v214 = vld [vmem:[%s169 + $0x150] sm:$0xff]
        %v215 = vld [vmem:[%s169 + $0x158] sm:$0xff]
        %v216 = vld [vmem:[%s169 + $0x160] sm:$0xff]
        %v217 = vld [vmem:[%s169 + $0x168] sm:$0xff]
        %v218 = vld [vmem:[%s169 + $0x170] sm:$0xff]
        %v219 = vld [vmem:[%s169 + $0x178] sm:$0xff]
        %v220 = vld [vmem:[%s1] sm:$0xff]
        %v221 = vld [vmem:[%s1 + $0x8] sm:$0xff]
        %v222 = vld [vmem:[%s1 + $0x10] sm:$0xff]
        %v223 = vld [vmem:[%s1 + $0x18] sm:$0xff]
        %v224 = vld [vmem:[%s2] sm:$0x1]
        %v226 = vlaneseq
        %v227 = vshrl.u32 %v226, 7
        %v228 = vsub.s32 0, %v227
        %v229 = vrot.slane %v224, %v228
        %vm231 = vcmask 261120
        %v233 = vsel %vm231, %v172, 0
        %v236 = vsel %vm231, %v173, 0
        %v239 = vsel %vm231, %v174, 0
        %v242 = vsel %vm231, %v175, 0
        %v245 = vsel %vm231, %v176, 0
        %v248 = vsel %vm231, %v177, 0
        %v251 = vsel %vm231, %v178, 0
        %v254 = vsel %vm231, %v179, 0
        %v257 = vsel %vm231, %v180, 0
        %v260 = vsel %vm231, %v181, 0
        %v263 = vsel %vm231, %v182, 0
        %v266 = vsel %vm231, %v183, 0
        %v269 = vsel %vm231, %v184, 0
        %v272 = vsel %vm231, %v185, 0
        %v275 = vsel %vm231, %v186, 0
        %v278 = vsel %vm231, %v187, 0
        %v281 = vsel %vm231, %v188, 0
        %v284 = vsel %vm231, %v189, 0
        %v287 = vsel %vm231, %v190, 0
        %v290 = vsel %vm231, %v191, 0
        %v293 = vsel %vm231, %v192, 0
        %v296 = vsel %vm231, %v193, 0
        %v299 = vsel %vm231, %v194, 0
        %v302 = vsel %vm231, %v195, 0
        %v305 = vsel %vm231, %v196, 0
        %v308 = vsel %vm231, %v197, 0
        %v311 = vsel %vm231, %v198, 0
        %v314 = vsel %vm231, %v199, 0
        %v317 = vsel %vm231, %v200, 0
        %v320 = vsel %vm231, %v201, 0
        %v323 = vsel %vm231, %v202, 0
        %v326 = vsel %vm231, %v203, 0
        %v329 = vsel %vm231, %v204, 0
        %v332 = vsel %vm231, %v205, 0
        %v335 = vsel %vm231, %v206, 0
        %v338 = vsel %vm231, %v207, 0
        %v341 = vsel %vm231, %v208, 0
        %v344 = vsel %vm231, %v209, 0
        %v347 = vsel %vm231, %v210, 0
        %v350 = vsel %vm231, %v211, 0
        %v353 = vsel %vm231, %v212, 0
        %v356 = vsel %vm231, %v213, 0
        %v359 = vsel %vm231, %v214, 0
        %v362 = vsel %vm231, %v215, 0
        %v365 = vsel %vm231, %v216, 0
        %v368 = vsel %vm231, %v217, 0
        %v371 = vsel %vm231, %v218, 0
        %v374 = vsel %vm231, %v219, 0
        %376 = vmatprep.subr.mxu0 0.0
        %377 = vmatpush1.msra.mxu0 %v220
        %378 = vmatprep.subr.mxu0 0.0
        %379 = vmatpush1.msra.mxu0 %v221
        %380 = vmatprep.subr.mxu0 0.0
        %381 = vmatpush1.msra.mxu0 %v222
        %382 = vmatprep.subr.mxu0 0.0
        %383 = vmatpush1.msra.mxu0 %v223
        %384 = vmatprep.subr.mxu0 0.0
        %385 = vmatpush1.msra.mxu0 0.0
        %386 = vmatprep.subr.mxu0 0.0
        %387 = vmatpush1.msra.mxu0 0.0
        %388 = vmatprep.subr.mxu0 0.0
        %389 = vmatpush1.msra.mxu0 0.0
        %390 = vmatprep.subr.mxu0 0.0
        %391 = vmatpush1.msra.mxu0 0.0
        %392 = vmatprep.subr.mxu0 0.0
        %393 = vmatpush1.msra.mxu0 0.0
        %394 = vmatprep.subr.mxu0 0.0
        %395 = vmatpush1.msra.mxu0 0.0
        %396 = vmatprep.subr.mxu0 0.0
        %397 = vmatpush1.msra.mxu0 0.0
        %398 = vmatprep.subr.mxu0 0.0
        %399 = vmatpush1.msra.mxu0 0.0
        %400 = vmatprep.subr.mxu0 0.0
        %401 = vmatpush1.msra.mxu0 0.0
        %402 = vmatprep.subr.mxu0 0.0
        %403 = vmatpush1.msra.mxu0 0.0
        %404 = vmatprep.subr.mxu0 0.0
        %405 = vmatpush1.msra.mxu0 0.0
        %406 = vmatprep.subr.mxu0 0.0
        %407 = vmatpush1.msra.mxu0 0.0
        %408 = vmatprep.subr.mxu0 0.0
        %409 = vmatpush1.msra.mxu0 0.0
        %410 = vmatprep.subr.mxu0 0.0
        %411 = vmatpush1.msra.mxu0 0.0
        %412 = vmatprep.subr.mxu0 0.0
        %413 = vmatpush1.msra.mxu0 0.0
        %414 = vmatprep.subr.mxu0 0.0
        %415 = vmatpush1.msra.mxu0 0.0
        %416 = vmatprep.subr.mxu0 0.0
        %417 = vmatpush1.msra.mxu0 0.0
        %418 = vmatprep.subr.mxu0 0.0
        %419 = vmatpush1.msra.mxu0 0.0
        %420 = vmatprep.subr.mxu0 0.0
        %421 = vmatpush1.msra.mxu0 0.0
        %422 = vmatprep.subr.mxu0 0.0
        %423 = vmatpush1.msra.mxu0 0.0
        %424 = vmatprep.subr.mxu0 0.0
        %425 = vmatpush1.msra.mxu0 0.0
        %426 = vmatprep.subr.mxu0 0.0
        %427 = vmatpush1.msra.mxu0 0.0
        %428 = vmatprep.subr.mxu0 0.0
        %429 = vmatpush1.msra.mxu0 0.0
        %430 = vmatprep.subr.mxu0 0.0
        %431 = vmatpush1.msra.mxu0 0.0
        %432 = vmatprep.subr.mxu0 0.0
        %433 = vmatpush1.msra.mxu0 0.0
        %434 = vmatprep.subr.mxu0 0.0
        %435 = vmatpush1.msra.mxu0 0.0
        %436 = vmatprep.subr.mxu0 0.0
        %437 = vmatpush1.msra.mxu0 0.0
        %438 = vmatprep.subr.mxu0 0.0
        %439 = vmatpush1.msra.mxu0 0.0
        %440 = vmatprep.mubr.f32.mxu0 0.0
        %441 = vmatmul.mubr.f32.gmra.mrb[0].mxu0 %v233
        %v442 = vpop.f32.mrb[0].mxu0
        %v443 = vadd.f32 %v229, %v442
        %v444 = vpop.f32.mrb[0].mxu0
        %445 = vmatprep.mubr.f32.mxu0 0.0
        %446 = vmatmul.mubr.f32.gmra.mrb[0].mxu0 %v236
        %v447 = vpop.f32.mrb[0].mxu0
        %v448 = vadd.f32 %v229, %v447
        %v449 = vpop.f32.mrb[0].mxu0
        %450 = vmatprep.mubr.f32.mxu0 0.0
        %451 = vmatmul.mubr.f32.gmra.mrb[0].mxu0 %v239
        %v452 = vpop.f32.mrb[0].mxu0
        %v453 = vadd.f32 %v229, %v452
        %v454 = vpop.f32.mrb[0].mxu0
        %455 = vmatprep.mubr.f32.mxu0 0.0
        %456 = vmatmul.mubr.f32.gmra.mrb[0].mxu0 %v242
        %v457 = vpop.f32.mrb[0].mxu0
        %v458 = vadd.f32 %v229, %v457
        %v459 = vpop.f32.mrb[0].mxu0
        %460 = vmatprep.mubr.f32.mxu0 0.0
        %461 = vmatmul.mubr.f32.gmra.mrb[0].mxu0 %v245
        %v462 = vpop.f32.mrb[0].mxu0
        %v463 = vadd.f32 %v229, %v462
        %v464 = vpop.f32.mrb[0].mxu0
        %465 = vmatprep.mubr.f32.mxu0 0.0
        %466 = vmatmul.mubr.f32.gmra.mrb[0].mxu0 %v248
        %v467 = vpop.f32.mrb[0].mxu0
        %v468 = vadd.f32 %v229, %v467
        %v469 = vpop.f32.mrb[0].mxu0
        %470 = vmatprep.mubr.f32.mxu0 0.0
        %471 = vmatmul.mubr.f32.gmra.mrb[0].mxu0 %v251
        %v472 = vpop.f32.mrb[0].mxu0
        %v473 = vadd.f32 %v229, %v472
        %v474 = vpop.f32.mrb[0].mxu0
        %475 = vmatprep.mubr.f32.mxu0 0.0
        %476 = vmatmul.mubr.f32.gmra.mrb[0].mxu0 %v254
        %v477 = vpop.f32.mrb[0].mxu0
        %v478 = vadd.f32 %v229, %v477
        %v479 = vpop.f32.mrb[0].mxu0
        %480 = vmatprep.mubr.f32.mxu0 0.0
        %481 = vmatmul.mubr.f32.gmra.mrb[0].mxu0 %v257
        %v482 = vpop.f32.mrb[0].mxu0
        %v483 = vadd.f32 %v229, %v482
        %v484 = vpop.f32.mrb[0].mxu0
        %485 = vmatprep.mubr.f32.mxu0 0.0
        %486 = vmatmul.mubr.f32.gmra.mrb[0].mxu0 %v260
        %v487 = vpop.f32.mrb[0].mxu0
        %v488 = vadd.f32 %v229, %v487
        %v489 = vpop.f32.mrb[0].mxu0
        %490 = vmatprep.mubr.f32.mxu0 0.0
        %491 = vmatmul.mubr.f32.gmra.mrb[0].mxu0 %v263
        %v492 = vpop.f32.mrb[0].mxu0
        %v493 = vadd.f32 %v229, %v492
        %v494 = vpop.f32.mrb[0].mxu0
        %495 = vmatprep.mubr.f32.mxu0 0.0
        %496 = vmatmul.mubr.f32.gmra.mrb[0].mxu0 %v266
        %v497 = vpop.f32.mrb[0].mxu0
        %v498 = vadd.f32 %v229, %v497
        %v499 = vpop.f32.mrb[0].mxu0
        %500 = vmatprep.mubr.f32.mxu0 0.0
        %501 = vmatmul.mubr.f32.gmra.mrb[0].mxu0 %v269
        %v502 = vpop.f32.mrb[0].mxu0
        %v503 = vadd.f32 %v229, %v502
        %v504 = vpop.f32.mrb[0].mxu0
        %505 = vmatprep.mubr.f32.mxu0 0.0
        %506 = vmatmul.mubr.f32.gmra.mrb[0].mxu0 %v272
        %v507 = vpop.f32.mrb[0].mxu0
        %v508 = vadd.f32 %v229, %v507
        %v509 = vpop.f32.mrb[0].mxu0
        %510 = vmatprep.mubr.f32.mxu0 0.0
        %511 = vmatmul.mubr.f32.gmra.mrb[0].mxu0 %v275
        %v512 = vpop.f32.mrb[0].mxu0
        %v513 = vadd.f32 %v229, %v512
        %v514 = vpop.f32.mrb[0].mxu0
        %515 = vmatprep.mubr.f32.mxu0 0.0
        %516 = vmatmul.mubr.f32.gmra.mrb[0].mxu0 %v278
        %v517 = vpop.f32.mrb[0].mxu0
        %v518 = vadd.f32 %v229, %v517
        %v519 = vpop.f32.mrb[0].mxu0
        %520 = vmatprep.mubr.f32.mxu0 0.0
        %521 = vmatmul.mubr.f32.gmra.mrb[0].mxu0 %v281
        %v522 = vpop.f32.mrb[0].mxu0
        %v523 = vadd.f32 %v229, %v522
        %v524 = vpop.f32.mrb[0].mxu0
        %525 = vmatprep.mubr.f32.mxu0 0.0
        %526 = vmatmul.mubr.f32.gmra.mrb[0].mxu0 %v284
        %v527 = vpop.f32.mrb[0].mxu0
        %v528 = vadd.f32 %v229, %v527
        %v529 = vpop.f32.mrb[0].mxu0
        %530 = vmatprep.mubr.f32.mxu0 0.0
        %531 = vmatmul.mubr.f32.gmra.mrb[0].mxu0 %v287
        %v532 = vpop.f32.mrb[0].mxu0
        %v533 = vadd.f32 %v229, %v532
        %v534 = vpop.f32.mrb[0].mxu0
        %535 = vmatprep.mubr.f32.mxu0 0.0
        %536 = vmatmul.mubr.f32.gmra.mrb[0].mxu0 %v290
        %v537 = vpop.f32.mrb[0].mxu0
        %v538 = vadd.f32 %v229, %v537
        %v539 = vpop.f32.mrb[0].mxu0
        %540 = vmatprep.mubr.f32.mxu0 0.0
        %541 = vmatmul.mubr.f32.gmra.mrb[0].mxu0 %v293
        %v542 = vpop.f32.mrb[0].mxu0
        %v543 = vadd.f32 %v229, %v542
        %v544 = vpop.f32.mrb[0].mxu0
        %545 = vmatprep.mubr.f32.mxu0 0.0
        %546 = vmatmul.mubr.f32.gmra.mrb[0].mxu0 %v296
        %v547 = vpop.f32.mrb[0].mxu0
        %v548 = vadd.f32 %v229, %v547
        %v549 = vpop.f32.mrb[0].mxu0
        %550 = vmatprep.mubr.f32.mxu0 0.0
        %551 = vmatmul.mubr.f32.gmra.mrb[0].mxu0 %v299
        %v552 = vpop.f32.mrb[0].mxu0
        %v553 = vadd.f32 %v229, %v552
        %v554 = vpop.f32.mrb[0].mxu0
        %555 = vmatprep.mubr.f32.mxu0 0.0
        %556 = vmatmul.mubr.f32.gmra.mrb[0].mxu0 %v302
        %v557 = vpop.f32.mrb[0].mxu0
        %v558 = vadd.f32 %v229, %v557
        %v559 = vpop.f32.mrb[0].mxu0
        %560 = vmatprep.mubr.f32.mxu0 0.0
        %561 = vmatmul.mubr.f32.gmra.mrb[0].mxu0 %v305
        %v562 = vpop.f32.mrb[0].mxu0
        %v563 = vadd.f32 %v229, %v562
        %v564 = vpop.f32.mrb[0].mxu0
        %565 = vmatprep.mubr.f32.mxu0 0.0
        %566 = vmatmul.mubr.f32.gmra.mrb[0].mxu0 %v308
        %v567 = vpop.f32.mrb[0].mxu0
        %v568 = vadd.f32 %v229, %v567
        %v569 = vpop.f32.mrb[0].mxu0
        %570 = vmatprep.mubr.f32.mxu0 0.0
        %571 = vmatmul.mubr.f32.gmra.mrb[0].mxu0 %v311
        %v572 = vpop.f32.mrb[0].mxu0
        %v573 = vadd.f32 %v229, %v572
        %v574 = vpop.f32.mrb[0].mxu0
        %575 = vmatprep.mubr.f32.mxu0 0.0
        %576 = vmatmul.mubr.f32.gmra.mrb[0].mxu0 %v314
        %v577 = vpop.f32.mrb[0].mxu0
        %v578 = vadd.f32 %v229, %v577
        %v579 = vpop.f32.mrb[0].mxu0
        %580 = vmatprep.mubr.f32.mxu0 0.0
        %581 = vmatmul.mubr.f32.gmra.mrb[0].mxu0 %v317
        %v582 = vpop.f32.mrb[0].mxu0
        %v583 = vadd.f32 %v229, %v582
        %v584 = vpop.f32.mrb[0].mxu0
        %585 = vmatprep.mubr.f32.mxu0 0.0
        %586 = vmatmul.mubr.f32.gmra.mrb[0].mxu0 %v320
        %v587 = vpop.f32.mrb[0].mxu0
        %v588 = vadd.f32 %v229, %v587
        %v589 = vpop.f32.mrb[0].mxu0
        %590 = vmatprep.mubr.f32.mxu0 0.0
        %591 = vmatmul.mubr.f32.gmra.mrb[0].mxu0 %v323
        %v592 = vpop.f32.mrb[0].mxu0
        %v593 = vadd.f32 %v229, %v592
        %v594 = vpop.f32.mrb[0].mxu0
        %595 = vmatprep.mubr.f32.mxu0 0.0
        %596 = vmatmul.mubr.f32.gmra.mrb[0].mxu0 %v326
        %v597 = vpop.f32.mrb[0].mxu0
        %v598 = vadd.f32 %v229, %v597
        %v599 = vpop.f32.mrb[0].mxu0
        %600 = vmatprep.mubr.f32.mxu0 0.0
        %601 = vmatmul.mubr.f32.gmra.mrb[0].mxu0 %v329
        %v602 = vpop.f32.mrb[0].mxu0
        %v603 = vadd.f32 %v229, %v602
        %v604 = vpop.f32.mrb[0].mxu0
        %605 = vmatprep.mubr.f32.mxu0 0.0
        %606 = vmatmul.mubr.f32.gmra.mrb[0].mxu0 %v332
        %v607 = vpop.f32.mrb[0].mxu0
        %v608 = vadd.f32 %v229, %v607
        %v609 = vpop.f32.mrb[0].mxu0
        %610 = vmatprep.mubr.f32.mxu0 0.0
        %611 = vmatmul.mubr.f32.gmra.mrb[0].mxu0 %v335
        %v612 = vpop.f32.mrb[0].mxu0
        %v613 = vadd.f32 %v229, %v612
        %v614 = vpop.f32.mrb[0].mxu0
        %615 = vmatprep.mubr.f32.mxu0 0.0
        %616 = vmatmul.mubr.f32.gmra.mrb[0].mxu0 %v338
        %v617 = vpop.f32.mrb[0].mxu0
        %v618 = vadd.f32 %v229, %v617
        %v619 = vpop.f32.mrb[0].mxu0
        %620 = vmatprep.mubr.f32.mxu0 0.0
        %621 = vmatmul.mubr.f32.gmra.mrb[0].mxu0 %v341
        %v622 = vpop.f32.mrb[0].mxu0
        %v623 = vadd.f32 %v229, %v622
        %v624 = vpop.f32.mrb[0].mxu0
        %625 = vmatprep.mubr.f32.mxu0 0.0
        %626 = vmatmul.mubr.f32.gmra.mrb[0].mxu0 %v344
        %v627 = vpop.f32.mrb[0].mxu0
        %v628 = vadd.f32 %v229, %v627
        %v629 = vpop.f32.mrb[0].mxu0
        %630 = vmatprep.mubr.f32.mxu0 0.0
        %631 = vmatmul.mubr.f32.gmra.mrb[0].mxu0 %v347
        %v632 = vpop.f32.mrb[0].mxu0
        %v633 = vadd.f32 %v229, %v632
        %v634 = vpop.f32.mrb[0].mxu0
        %635 = vmatprep.mubr.f32.mxu0 0.0
        %636 = vmatmul.mubr.f32.gmra.mrb[0].mxu0 %v350
        %v637 = vpop.f32.mrb[0].mxu0
        %v638 = vadd.f32 %v229, %v637
        %v639 = vpop.f32.mrb[0].mxu0
        %640 = vmatprep.mubr.f32.mxu0 0.0
        %641 = vmatmul.mubr.f32.gmra.mrb[0].mxu0 %v353
        %v642 = vpop.f32.mrb[0].mxu0
        %v643 = vadd.f32 %v229, %v642
        %v644 = vpop.f32.mrb[0].mxu0
        %645 = vmatprep.mubr.f32.mxu0 0.0
        %646 = vmatmul.mubr.f32.gmra.mrb[0].mxu0 %v356
        %v647 = vpop.f32.mrb[0].mxu0
        %v648 = vadd.f32 %v229, %v647
        %v649 = vpop.f32.mrb[0].mxu0
        %650 = vmatprep.mubr.f32.mxu0 0.0
        %651 = vmatmul.mubr.f32.gmra.mrb[0].mxu0 %v359
        %v652 = vpop.f32.mrb[0].mxu0
        %v653 = vadd.f32 %v229, %v652
        %v654 = vpop.f32.mrb[0].mxu0
        %655 = vmatprep.mubr.f32.mxu0 0.0
        %656 = vmatmul.mubr.f32.gmra.mrb[0].mxu0 %v362
        %v657 = vpop.f32.mrb[0].mxu0
        %v658 = vadd.f32 %v229, %v657
        %v659 = vpop.f32.mrb[0].mxu0
        %660 = vmatprep.mubr.f32.mxu0 0.0
        %661 = vmatmul.mubr.f32.gmra.mrb[0].mxu0 %v365
        %v662 = vpop.f32.mrb[0].mxu0
        %v663 = vadd.f32 %v229, %v662
        %v664 = vpop.f32.mrb[0].mxu0
        %665 = vmatprep.mubr.f32.mxu0 0.0
        %666 = vmatmul.mubr.f32.gmra.mrb[0].mxu0 %v368
        %v667 = vpop.f32.mrb[0].mxu0
        %v668 = vadd.f32 %v229, %v667
        %v669 = vpop.f32.mrb[0].mxu0
        %670 = vmatprep.mubr.f32.mxu0 0.0
        %671 = vmatmul.mubr.f32.gmra.mrb[0].mxu0 %v371
        %v672 = vpop.f32.mrb[0].mxu0
        %v673 = vadd.f32 %v229, %v672
        %v674 = vpop.f32.mrb[0].mxu0
        %675 = vmatprep.mubr.f32.mxu0 0.0
        %676 = vmatmul.mubr.f32.gmra.mrb[0].mxu0 %v374
        %v677 = vpop.f32.mrb[0].mxu0
        %v678 = vadd.f32 %v229, %v677
        %v679 = vpop.f32.mrb[0].mxu0
        %680 = vdwg.mxu0
        %vm681 = vcmp.gt.f32.partialorder %v443, 0.0
        %vm682 = vcmp.gt.f32.partialorder %v448, 0.0
        %vm683 = vcmp.gt.f32.partialorder %v453, 0.0
        %vm684 = vcmp.gt.f32.partialorder %v458, 0.0
        %vm685 = vcmp.gt.f32.partialorder %v463, 0.0
        %vm686 = vcmp.gt.f32.partialorder %v468, 0.0
        %vm687 = vcmp.gt.f32.partialorder %v473, 0.0
        %vm688 = vcmp.gt.f32.partialorder %v478, 0.0
        %vm689 = vcmp.gt.f32.partialorder %v483, 0.0
        %vm690 = vcmp.gt.f32.partialorder %v488, 0.0
        %vm691 = vcmp.gt.f32.partialorder %v493, 0.0
        %vm692 = vcmp.gt.f32.partialorder %v498, 0.0
        %vm693 = vcmp.gt.f32.partialorder %v503, 0.0
        %vm694 = vcmp.gt.f32.partialorder %v508, 0.0
        %vm695 = vcmp.gt.f32.partialorder %v513, 0.0
        %vm696 = vcmp.gt.f32.partialorder %v518, 0.0
        %vm697 = vcmp.gt.f32.partialorder %v523, 0.0
        %vm698 = vcmp.gt.f32.partialorder %v528, 0.0
        %vm699 = vcmp.gt.f32.partialorder %v533, 0.0
        %vm700 = vcmp.gt.f32.partialorder %v538, 0.0
        %vm701 = vcmp.gt.f32.partialorder %v543, 0.0
        %vm702 = vcmp.gt.f32.partialorder %v548, 0.0
        %vm703 = vcmp.gt.f32.partialorder %v553, 0.0
        %vm704 = vcmp.gt.f32.partialorder %v558, 0.0
        %vm705 = vcmp.gt.f32.partialorder %v563, 0.0
        %vm706 = vcmp.gt.f32.partialorder %v568, 0.0
        %vm707 = vcmp.gt.f32.partialorder %v573, 0.0
        %vm708 = vcmp.gt.f32.partialorder %v578, 0.0
        %vm709 = vcmp.gt.f32.partialorder %v583, 0.0
        %vm710 = vcmp.gt.f32.partialorder %v588, 0.0
        %vm711 = vcmp.gt.f32.partialorder %v593, 0.0
        %vm712 = vcmp.gt.f32.partialorder %v598, 0.0
        %vm713 = vcmp.gt.f32.partialorder %v603, 0.0
        %vm714 = vcmp.gt.f32.partialorder %v608, 0.0
        %vm715 = vcmp.gt.f32.partialorder %v613, 0.0
        %vm716 = vcmp.gt.f32.partialorder %v618, 0.0
        %vm717 = vcmp.gt.f32.partialorder %v623, 0.0
        %vm718 = vcmp.gt.f32.partialorder %v628, 0.0
        %vm719 = vcmp.gt.f32.partialorder %v633, 0.0
        %vm720 = vcmp.gt.f32.partialorder %v638, 0.0
        %vm721 = vcmp.gt.f32.partialorder %v643, 0.0
        %vm722 = vcmp.gt.f32.partialorder %v648, 0.0
        %vm723 = vcmp.gt.f32.partialorder %v653, 0.0
        %vm724 = vcmp.gt.f32.partialorder %v658, 0.0
        %vm725 = vcmp.gt.f32.partialorder %v663, 0.0
        %vm726 = vcmp.gt.f32.partialorder %v668, 0.0
        %vm727 = vcmp.gt.f32.partialorder %v673, 0.0
        %vm728 = vcmp.gt.f32.partialorder %v678, 0.0
        %v729 = vmul.f32 %v443, 0.01
        %v730 = vmul.f32 %v448, 0.01
        %v731 = vmul.f32 %v453, 0.01
        %v732 = vmul.f32 %v458, 0.01
        %v733 = vmul.f32 %v463, 0.01
        %v734 = vmul.f32 %v468, 0.01
        %v735 = vmul.f32 %v473, 0.01
        %v736 = vmul.f32 %v478, 0.01
        %v737 = vmul.f32 %v483, 0.01
        %v738 = vmul.f32 %v488, 0.01
        %v739 = vmul.f32 %v493, 0.01
        %v740 = vmul.f32 %v498, 0.01
        %v741 = vmul.f32 %v503, 0.01
        %v742 = vmul.f32 %v508, 0.01
        %v743 = vmul.f32 %v513, 0.01
        %v744 = vmul.f32 %v518, 0.01
        %v745 = vmul.f32 %v523, 0.01
        %v746 = vmul.f32 %v528, 0.01
        %v747 = vmul.f32 %v533, 0.01
        %v748 = vmul.f32 %v538, 0.01
        %v749 = vmul.f32 %v543, 0.01
        %v750 = vmul.f32 %v548, 0.01
        %v751 = vmul.f32 %v553, 0.01
        %v752 = vmul.f32 %v558, 0.01
        %v753 = vmul.f32 %v563, 0.01
        %v754 = vmul.f32 %v568, 0.01
        %v755 = vmul.f32 %v573, 0.01
        %v756 = vmul.f32 %v578, 0.01
        %v757 = vmul.f32 %v583, 0.01
        %v758 = vmul.f32 %v588, 0.01
        %v759 = vmul.f32 %v593, 0.01
        %v760 = vmul.f32 %v598, 0.01
        %v761 = vmul.f32 %v603, 0.01
        %v762 = vmul.f32 %v608, 0.01
        %v763 = vmul.f32 %v613, 0.01
        %v764 = vmul.f32 %v618, 0.01
        %v765 = vmul.f32 %v623, 0.01
        %v766 = vmul.f32 %v628, 0.01
        %v767 = vmul.f32 %v633, 0.01
        %v768 = vmul.f32 %v638, 0.01
        %v769 = vmul.f32 %v643, 0.01
        %v770 = vmul.f32 %v648, 0.01
        %v771 = vmul.f32 %v653, 0.01
        %v772 = vmul.f32 %v658, 0.01
        %v773 = vmul.f32 %v663, 0.01
        %v774 = vmul.f32 %v668, 0.01
        %v775 = vmul.f32 %v673, 0.01
        %v776 = vmul.f32 %v678, 0.01
        %v777 = vsel %vm681, %v443, %v729
        %v778 = vsel %vm682, %v448, %v730
        %v779 = vsel %vm683, %v453, %v731
        %v780 = vsel %vm684, %v458, %v732
        %v781 = vsel %vm685, %v463, %v733
        %v782 = vsel %vm686, %v468, %v734
        %v783 = vsel %vm687, %v473, %v735
        %v784 = vsel %vm688, %v478, %v736
        %v785 = vsel %vm689, %v483, %v737
        %v786 = vsel %vm690, %v488, %v738
        %v787 = vsel %vm691, %v493, %v739
        %v788 = vsel %vm692, %v498, %v740
        %v789 = vsel %vm693, %v503, %v741
        %v790 = vsel %vm694, %v508, %v742
        %v791 = vsel %vm695, %v513, %v743
        %v792 = vsel %vm696, %v518, %v744
        %v793 = vsel %vm697, %v523, %v745
        %v794 = vsel %vm698, %v528, %v746
        %v795 = vsel %vm699, %v533, %v747
        %v796 = vsel %vm700, %v538, %v748
        %v797 = vsel %vm701, %v543, %v749
        %v798 = vsel %vm702, %v548, %v750
        %v799 = vsel %vm703, %v553, %v751
        %v800 = vsel %vm704, %v558, %v752
        %v801 = vsel %vm705, %v563, %v753
        %v802 = vsel %vm706, %v568, %v754
        %v803 = vsel %vm707, %v573, %v755
        %v804 = vsel %vm708, %v578, %v756
        %v805 = vsel %vm709, %v583, %v757
        %v806 = vsel %vm710, %v588, %v758
        %v807 = vsel %vm711, %v593, %v759
        %v808 = vsel %vm712, %v598, %v760
        %v809 = vsel %vm713, %v603, %v761
        %v810 = vsel %vm714, %v608, %v762
        %v811 = vsel %vm715, %v613, %v763
        %v812 = vsel %vm716, %v618, %v764
        %v813 = vsel %vm717, %v623, %v765
        %v814 = vsel %vm718, %v628, %v766
        %v815 = vsel %vm719, %v633, %v767
        %v816 = vsel %vm720, %v638, %v768
        %v817 = vsel %vm721, %v643, %v769
        %v818 = vsel %vm722, %v648, %v770
        %v819 = vsel %vm723, %v653, %v771
        %v820 = vsel %vm724, %v658, %v772
        %v821 = vsel %vm725, %v663, %v773
        %v822 = vsel %vm726, %v668, %v774
        %v823 = vsel %vm727, %v673, %v775
        %v824 = vsel %vm728, %v678, %v776
        %vm825 = vcmask 523264
        %826 = vst.msk [vmem:[%s164] sm:$0xff] %vm825, %v777
        %827 = vst.msk [vmem:[%s164 + $0x8] sm:$0xff] %vm825, %v778
        %828 = vst.msk [vmem:[%s164 + $0x10] sm:$0xff] %vm825, %v779
        %829 = vst.msk [vmem:[%s164 + $0x18] sm:$0xff] %vm825, %v780
        %830 = vst.msk [vmem:[%s164 + $0x20] sm:$0xff] %vm825, %v781
        %831 = vst.msk [vmem:[%s164 + $0x28] sm:$0xff] %vm825, %v782
        %832 = vst.msk [vmem:[%s164 + $0x30] sm:$0xff] %vm825, %v783
        %833 = vst.msk [vmem:[%s164 + $0x38] sm:$0xff] %vm825, %v784
        %834 = vst.msk [vmem:[%s164 + $0x40] sm:$0xff] %vm825, %v785
        %835 = vst.msk [vmem:[%s164 + $0x48] sm:$0xff] %vm825, %v786
        %836 = vst.msk [vmem:[%s164 + $0x50] sm:$0xff] %vm825, %v787
        %837 = vst.msk [vmem:[%s164 + $0x58] sm:$0xff] %vm825, %v788
        %838 = vst.msk [vmem:[%s164 + $0x60] sm:$0xff] %vm825, %v789
        %839 = vst.msk [vmem:[%s164 + $0x68] sm:$0xff] %vm825, %v790
        %840 = vst.msk [vmem:[%s164 + $0x70] sm:$0xff] %vm825, %v791
        %841 = vst.msk [vmem:[%s164 + $0x78] sm:$0xff] %vm825, %v792
        %842 = vst.msk [vmem:[%s164 + $0x80] sm:$0xff] %vm825, %v793
        %843 = vst.msk [vmem:[%s164 + $0x88] sm:$0xff] %vm825, %v794
        %844 = vst.msk [vmem:[%s164 + $0x90] sm:$0xff] %vm825, %v795
        %845 = vst.msk [vmem:[%s164 + $0x98] sm:$0xff] %vm825, %v796
        %846 = vst.msk [vmem:[%s164 + $0xa0] sm:$0xff] %vm825, %v797
        %847 = vst.msk [vmem:[%s164 + $0xa8] sm:$0xff] %vm825, %v798
        %848 = vst.msk [vmem:[%s164 + $0xb0] sm:$0xff] %vm825, %v799
        %849 = vst.msk [vmem:[%s164 + $0xb8] sm:$0xff] %vm825, %v800
        %850 = vst.msk [vmem:[%s164 + $0xc0] sm:$0xff] %vm825, %v801
        %851 = vst.msk [vmem:[%s164 + $0xc8] sm:$0xff] %vm825, %v802
        %852 = vst.msk [vmem:[%s164 + $0xd0] sm:$0xff] %vm825, %v803
        %853 = vst.msk [vmem:[%s164 + $0xd8] sm:$0xff] %vm825, %v804
        %854 = vst.msk [vmem:[%s164 + $0xe0] sm:$0xff] %vm825, %v805
        %855 = vst.msk [vmem:[%s164 + $0xe8] sm:$0xff] %vm825, %v806
        %856 = vst.msk [vmem:[%s164 + $0xf0] sm:$0xff] %vm825, %v807
        %857 = vst.msk [vmem:[%s164 + $0xf8] sm:$0xff] %vm825, %v808
        %858 = vst.msk [vmem:[%s164 + $0x100] sm:$0xff] %vm825, %v809
        %859 = vst.msk [vmem:[%s164 + $0x108] sm:$0xff] %vm825, %v810
        %860 = vst.msk [vmem:[%s164 + $0x110] sm:$0xff] %vm825, %v811
        %861 = vst.msk [vmem:[%s164 + $0x118] sm:$0xff] %vm825, %v812
        %862 = vst.msk [vmem:[%s164 + $0x120] sm:$0xff] %vm825, %v813
        %863 = vst.msk [vmem:[%s164 + $0x128] sm:$0xff] %vm825, %v814
        %864 = vst.msk [vmem:[%s164 + $0x130] sm:$0xff] %vm825, %v815
        %865 = vst.msk [vmem:[%s164 + $0x138] sm:$0xff] %vm825, %v816
        %866 = vst.msk [vmem:[%s164 + $0x140] sm:$0xff] %vm825, %v817
        %867 = vst.msk [vmem:[%s164 + $0x148] sm:$0xff] %vm825, %v818
        %868 = vst.msk [vmem:[%s164 + $0x150] sm:$0xff] %vm825, %v819
        %869 = vst.msk [vmem:[%s164 + $0x158] sm:$0xff] %vm825, %v820
        %870 = vst.msk [vmem:[%s164 + $0x160] sm:$0xff] %vm825, %v821
        %871 = vst.msk [vmem:[%s164 + $0x168] sm:$0xff] %vm825, %v822
        %872 = vst.msk [vmem:[%s164 + $0x170] sm:$0xff] %vm825, %v823
        %873 = vst.msk [vmem:[%s164 + $0x178] sm:$0xff] %vm825, %v824
        %s874 = sand.u32 %s93, 1
        %s875 = scalar_lea.sflag [#allocation3], %s874
        %s876 = sand.u32 %s93, 1
        %s877 = smul.addr %s876, 384
        %s878 = scalar_lea.vmem [#allocation2], %s877
        // Predicated region
        $region33: #{gcn_operation_forward.3} parent=31 // pred_check
          %p879 = pneg %p103
        $region34: #{gcn_operation_forward.3} parent=31 // pred_check_branch
          %881 = sbr.rel (%p879) target = $region36
        $region35: #{gcn_operation_forward.3} parent=31 // pred_region
          %s882 = smul.u32 48, %s17
          %s884 = ssub.s32 6144, 6144
          %885 = vsyncadd %s875, %s884
          %s886 = smul.addr %s882, 128
          %s887 = scalar_lea.hbm %s3, %s886
          %s888 = sshll.u32 %s878, 4
          %s889 = int_to_ptr.vmem [resolvable:$true] %s888
          %894 = dma.vmem_to_hbm [thread:$0]  %s889, 6144, %s887, %s875, 128, 128, 8
        $region36: #{gcn_operation_forward.3} parent=31 // pred_fallthru
          _
      $region32: #{gcn_operation_forward.3} parent=5 // pred_fallthru
        _
      %p895 = scmp.le.s32.totalorder 2, %s12
      // Predicated region
      $region37: #{gcn_operation_forward.3} parent=5 // pred_check
        %p896 = pneg %p895
      $region38: #{gcn_operation_forward.3} parent=5 // pred_check_branch
        %898 = sbr.rel (%p896) target = $region40
      $region39: #{gcn_operation_forward.3} parent=5 // pred_region
        %s899 = ssub.s32 %s12, 2
        // Predicated region
        $region41: #{gcn_operation_forward.3} parent=39 // pred_check
          %p900 = pneg %p109
        $region42: #{gcn_operation_forward.3} parent=39 // pred_check_branch
          %902 = sbr.rel (%p900) target = $region44
        $region43: #{gcn_operation_forward.3} parent=39 // pred_region
          %s903 = sand.u32 %s94, 1
          %s904 = scalar_lea.sflag [#allocation3], %s903
          %s905 = sand.u32 %s94, 1
          %s906 = smul.addr %s905, 384
          %s907 = scalar_lea.vmem [#allocation2], %s906
          %908 = dma.done %s904, 6144
        $region44: #{gcn_operation_forward.3} parent=39 // pred_fallthru
          _
      $region40: #{gcn_operation_forward.3} parent=5 // pred_fallthru
        _
    $region6: #{gcn_operation_forward.3} parent=1 // loop_footer
      %s16 = sadd.s32 1, %s12
    $region7: #{gcn_operation_forward.3} parent=1 // loop_footer_branch
      %11 = sbr.rel target = $region3
    $region8: #{gcn_operation_forward.3} parent=1 // loop_exit
      _
    %909 = vsyncpa [#allocation3], 1
    %s910 = scalar_lea.sflag [#allocation3], 1
    %911 = vsyncpa %s910, 1

</llo_original>
